<compile_context>
chip_gen: v6e
topology: v6e:2x2x1
jax: 0.10.0
libtpu: 0.0.40
codegen_flags: <defaults>
</compile_context>

<pallas_src>
import functools

import jax
import jax.numpy as jnp
from jax.experimental import pallas as pl
from jax.experimental.pallas import tpu as pltpu


def _round_up(v, m):
    return (v + m - 1) // m * m


def _largest_divisor_leq(n, cap):
    cap = max(1, min(n, cap))
    for d in range(cap, 0, -1):
        if n % d == 0:
            return d
    return 1


def _pick_tile_hw(hw, target):
    """Largest multiple of 128 that divides hw and is <= target (no padding needed);
    otherwise the biggest 128-multiple <= target (HW will be zero-padded)."""
    best = None
    t = 128
    lim = min(hw, target)
    while t <= lim:
        if hw % t == 0:
            best = t
        t += 128
    if best is None:
        best = min(_round_up(hw, 128), max(128, (target // 128) * 128))
    return best


def _classifier_kernel(x_ref, wb_ref, bb_ref, wfc_ref, bfc_ref, out_ref, gap_acc,
                       *, inv_hw):
    # x_ref:   (TB, C, T_HW)   f32, NCHW-flattened tile (HW chunk on the 128-lane axis)
    # wb_ref:  (C, F_pad)      bf16, stand-in backbone projection (pre-transposed), resident
    # bb_ref:  (1, F_pad)      f32, backbone bias, resident
    # wfc_ref: (F_pad, K_pad)  bf16, fc weight pre-transposed (weight.T), resident
    # bfc_ref: (1, K_pad)      f32, fc bias, resident
    # out_ref: (TB, K_pad)     f32, padded logits (resident across HW, written at last step)
    # gap_acc: (TB, C)         f32 VMEM scratch, running GAP sum
    hw_i = pl.program_id(1)

    @pl.when(hw_i == 0)
    def _():
        gap_acc[...] = jnp.zeros_like(gap_acc)

    # Partial global-average-pool sum.  x is streamed exactly as produced (f32, no cast);
    # the lane-axis reduce lands on XLU/VPU slots that have slack under the HBM stream.
    gap_acc[...] += jnp.sum(x_ref[...], axis=2)

    @pl.when(hw_i == pl.num_programs(1) - 1)
    def _():
        gap = (gap_acc[...] * inv_hw).astype(jnp.bfloat16)            # (TB, C) pooled features
        fea = jnp.dot(gap, wb_ref[...],
                      preferred_element_type=jnp.float32) + bb_ref[...]
        fea = jnp.maximum(fea, 0.0).astype(jnp.bfloat16)              # (TB, F_pad) backbone out
        logits = jnp.dot(fea, wfc_ref[...],
                         preferred_element_type=jnp.float32) + bfc_ref[...]
        out_ref[...] = logits                                         # lane-dense (TB, K_pad)


def classifier_forward(x_nchw, wb, bb, w_fc, b_fc, *, tile_b=None, tile_hw=None):
    """logits = fc(backbone(x)); backbone stand-in = GAP -> linear -> ReLU."""
    B, C, H, W = x_nchw.shape
    F = wb.shape[0]            # num_features
    K = w_fc.shape[0]          # num_classes
    HW = H * W

    F_pad = _round_up(F, 128)
    K_pad = _round_up(K, 128)

    # ---- glue (plain JAX) ---------------------------------------------------------------
    # Free contiguous view: no transpose, no cast, no extra HBM pass over x.
    x_flat = x_nchw.reshape(B, C, HW)
    itemsize = x_flat.dtype.itemsize

    # Resident parameters: bf16 weights (half VMEM, native MXU dtype), f32 biases,
    # zero-padded to lane-dense 128-multiples.
    wb_t = jnp.zeros((C, F_pad), jnp.bfloat16).at[:, :F].set(wb.T.astype(jnp.bfloat16))
    bb_p = jnp.zeros((1, F_pad), jnp.float32).at[:, :F].set(bb.astype(jnp.float32))
    wfc_t = jnp.zeros((F_pad, K_pad), jnp.bfloat16).at[:F, :K].set(
        w_fc.T.astype(jnp.bfloat16))
    bfc_p = jnp.zeros((1, K_pad), jnp.float32).at[:, :K].set(b_fc.astype(jnp.float32))

    # ---- per-generation VMEM budget -------------------------------------------------------
    try:
        vmem_cap = pltpu.get_tpu_info().vmem_capacity_bytes   # 128 MiB v5e/v6e, 64 MiB v7x
    except Exception:
        vmem_cap = 64 * 1024 * 1024
    target_block_bytes = max(2 << 20, vmem_cap // 24)         # MB-scale per-step DMA blocks

    # ---- tile selection --------------------------------------------------------------------
    if tile_b is None:
        if B >= 16:
            # >= 2 batch programs so the "parallel" axis shards across both v7x TensorCores,
            # and a decent M for the epilogue matmuls.
            tile_b = _largest_divisor_leq(B, min(B // 2, 64))
        else:
            tile_b = B
    assert B % tile_b == 0, "batch must be divisible by the batch tile"

    if tile_hw is None:
        target_hw = max(128, (target_block_bytes // (itemsize * tile_b * C)) // 128 * 128)
        tile_hw = _pick_tile_hw(HW, target_hw)
    tile_hw = max(128, _round_up(tile_hw, 128))

    HW_pad = _round_up(HW, tile_hw)
    if HW_pad != HW:
        # Zero-padding does not change the GAP sum (inv_hw uses the true HW) and keeps
        # uniform, pipeline-friendly blocks instead of one giant fallback block.
        x_flat = jnp.pad(x_flat, ((0, 0), (0, 0), (0, HW_pad - HW)))

    grid = (B // tile_b, HW_pad // tile_hw)

    # ---- specs --------------------------------------------------------------------------------
    x_spec = pl.BlockSpec((tile_b, C, tile_hw), lambda bi, hwi: (bi, 0, hwi))
    wb_spec = pl.BlockSpec((C, F_pad), lambda bi, hwi: (0, 0))         # resident weights
    bb_spec = pl.BlockSpec((1, F_pad), lambda bi, hwi: (0, 0))
    wfc_spec = pl.BlockSpec((F_pad, K_pad), lambda bi, hwi: (0, 0))
    bfc_spec = pl.BlockSpec((1, K_pad), lambda bi, hwi: (0, 0))
    out_spec = pl.BlockSpec((tile_b, K_pad), lambda bi, hwi: (bi, 0))  # resident across HW

    # VMEM budget: double-buffered x blocks + (double-buffered) bf16 weights + out + scratch.
    x_block_bytes = tile_b * C * tile_hw * itemsize
    weight_bytes = (wb_t.size + wfc_t.size) * 2 + (bb_p.size + bfc_p.size) * 4
    out_block_bytes = tile_b * K_pad * 4
    scratch_bytes = _round_up(tile_b, 8) * _round_up(C, 128) * 4
    needed = (2 * x_block_bytes + 2 * weight_bytes + 2 * out_block_bytes
              + scratch_bytes + (4 << 20))
    vmem_limit = int(min(max(needed, 32 << 20), 0.75 * vmem_cap))

    bytes_accessed = (x_flat.size * itemsize
                      + (wb_t.size + wfc_t.size) * 2
                      + (bb_p.size + bfc_p.size) * 4
                      + B * K_pad * 4)
    flops = 2 * B * HW * C + 2 * B * C * F_pad + 2 * B * F_pad * K_pad
    cost = pl.CostEstimate(flops=flops, transcendentals=0,
                           bytes_accessed=bytes_accessed)

    out_padded = pl.pallas_call(
        functools.partial(_classifier_kernel, inv_hw=1.0 / HW),
        out_shape=jax.ShapeDtypeStruct((B, K_pad), jnp.float32),
        grid_spec=pltpu.PrefetchScalarGridSpec(
            num_scalar_prefetch=0,
            grid=grid,
            in_specs=[x_spec, wb_spec, bb_spec, wfc_spec, bfc_spec],
            out_specs=out_spec,
            scratch_shapes=[pltpu.VMEM((tile_b, C), jnp.float32)],
        ),
        compiler_params=pltpu.CompilerParams(
            dimension_semantics=("parallel", "arbitrary"),
            vmem_limit_bytes=vmem_limit,
        ),
        cost_estimate=cost,
    )(x_flat, wb_t, bb_p, wfc_t, bfc_p)

    return out_padded[:, :K]


if __name__ == "__main__":
    key = jax.random.PRNGKey(0)
    B, C, H, W = 2, 4, 16, 16       # small NCHW input
    F, K = 32, 8                    # backbone num_features, num_classes

    k1, k2, k3, k4 = jax.random.split(key, 4)
    x = jax.random.normal(k1, (B, C, H, W), jnp.float32)

    # Stand-in backbone parameters (deterministic).
    wb = 0.1 * jax.random.normal(k2, (F, C), jnp.float32)
    bb = jnp.zeros((F,), jnp.float32)

    # fc = nn.Linear(num_features, num_classes), PyTorch-style U(-stdv, stdv) init.
    stdv = 1.0 / (F ** 0.5)
    w_fc = jax.random.uniform(k3, (K, F), jnp.float32, minval=-stdv, maxval=stdv)
    b_fc = jax.random.uniform(k4, (K,), jnp.float32, minval=-stdv, maxval=stdv)

    # tile_hw=128 -> 2 HW grid steps, exercising the pipelined GAP accumulation path.
    logits = classifier_forward(x, wb, bb, w_fc, b_fc, tile_hw=128)
    logits = jax.block_until_ready(logits)

    # Pure-JAX reference mirroring the kernel numerics (f32 GAP, bf16 matmul operands,
    # f32 accumulation and bias adds).
    gap_ref = x.reshape(B, C, H * W).mean(axis=2)                        # (B, C) f32
    fea_ref = jnp.maximum(
        jnp.dot(gap_ref.astype(jnp.bfloat16), wb.T.astype(jnp.bfloat16),
                preferred_element_type=jnp.float32) + bb, 0.0)
    ref = jnp.dot(fea_ref.astype(jnp.bfloat16), w_fc.T.astype(jnp.bfloat16),
                  preferred_element_type=jnp.float32) + b_fc

    assert logits.shape == (B, K)
    assert jnp.allclose(logits, ref, atol=2e-2, rtol=2e-2), (logits, ref)

    print("KERNEL_OK")
</pallas_src>

<mosaic_0001>
module attributes {stable_mosaic.version = 11 : i64} {
  func.func @_classifier_kernel(%arg0: i32, %arg1: i32, %arg2: memref<2x4x128xf32, #tpu.memory_space<vmem>>, %arg3: memref<4x128xbf16, #tpu.memory_space<vmem>>, %arg4: memref<1x128xf32, #tpu.memory_space<vmem>>, %arg5: memref<128x128xbf16, #tpu.memory_space<vmem>>, %arg6: memref<1x128xf32, #tpu.memory_space<vmem>>, %arg7: memref<2x128xf32, #tpu.memory_space<vmem>>, %arg8: memref<2x4xf32, #tpu.memory_space<vmem>>) attributes {dimension_semantics = [#tpu.dimension_semantics<parallel>, #tpu.dimension_semantics<arbitrary>], iteration_bounds = array<i64: 1, 2>, scalar_prefetch = 0 : i64, scratch_operands = 1 : i64, tpu.core_type = #tpu.core_type<tc>, window_params = [{transform_indices = @transform_0, window_bounds = array<i64: 2, 4, 128>}, {pipeline_mode = #tpu.pipeline_mode<synchronous>, transform_indices = @transform_1, window_bounds = array<i64: 4, 128>}, {pipeline_mode = #tpu.pipeline_mode<synchronous>, transform_indices = @transform_2, window_bounds = array<i64: 1, 128>}, {pipeline_mode = #tpu.pipeline_mode<synchronous>, transform_indices = @transform_3, window_bounds = array<i64: 128, 128>}, {pipeline_mode = #tpu.pipeline_mode<synchronous>, transform_indices = @transform_4, window_bounds = array<i64: 1, 128>}, {transform_indices = @transform_5, window_bounds = array<i64: 2, 128>}]} {
    %c0_i32 = arith.constant 0 : i32
    %0 = arith.cmpi eq, %arg1, %c0_i32 : i32
    %1 = arith.extui %0 : i1 to i32
    %c0_i32_0 = arith.constant 0 : i32
    %2 = arith.cmpi ne, %1, %c0_i32_0 : i32
    scf.if %2 {
      %cst_8 = arith.constant 0.000000e+00 : f32
      %11 = vector.broadcast %cst_8 : f32 to vector<2x4xf32>
      %c0_9 = arith.constant 0 : index
      %c0_10 = arith.constant 0 : index
      %12 = vector.load %arg8[%c0_9, %c0_10] : memref<2x4xf32, #tpu.memory_space<vmem>>, vector<2x4xf32>
      tpu.vector_store %arg8[%c0_9, %c0_10], %11 {strides = array<i32>} : memref<2x4xf32, #tpu.memory_space<vmem>>, vector<2x4xf32>,
    } else {
    }
    %c0 = arith.constant 0 : index
    %c0_1 = arith.constant 0 : index
    %3 = vector.load %arg8[%c0, %c0_1] : memref<2x4xf32, #tpu.memory_space<vmem>>, vector<2x4xf32>
    %c0_2 = arith.constant 0 : index
    %c0_3 = arith.constant 0 : index
    %c0_4 = arith.constant 0 : index
    %4 = vector.load %arg2[%c0_2, %c0_3, %c0_4] : memref<2x4x128xf32, #tpu.memory_space<vmem>>, vector<2x4x128xf32>
    %cst = arith.constant dense<0.000000e+00> : vector<2x4xf32>
    %5 = vector.multi_reduction <add>, %4, %cst [2] : vector<2x4x128xf32> to vector<2x4xf32>
    %6 = arith.addf %3, %5 : vector<2x4xf32>
    %c0_5 = arith.constant 0 : index
    %c0_6 = arith.constant 0 : index
    %7 = vector.load %arg8[%c0_5, %c0_6] : memref<2x4xf32, #tpu.memory_space<vmem>>, vector<2x4xf32>
    tpu.vector_store %arg8[%c0_5, %c0_6], %6 {strides = array<i32>} : memref<2x4xf32, #tpu.memory_space<vmem>>, vector<2x4xf32>,
    %c1_i32 = arith.constant 1 : i32
    %8 = arith.cmpi eq, %arg1, %c1_i32 : i32
    %9 = arith.extui %8 : i1 to i32
    %c0_i32_7 = arith.constant 0 : i32
    %10 = arith.cmpi ne, %9, %c0_i32_7 : i32
    scf.if %10 {
      %c0_8 = arith.constant 0 : index
      %c0_9 = arith.constant 0 : index
      %11 = vector.load %arg8[%c0_8, %c0_9] : memref<2x4xf32, #tpu.memory_space<vmem>>, vector<2x4xf32>
      %cst_10 = arith.constant 3.906250e-03 : f32
      %12 = vector.broadcast %cst_10 : f32 to vector<2x4xf32>
      %13 = arith.mulf %11, %12 : vector<2x4xf32>
      %14 = arith.truncf %13 : vector<2x4xf32> to vector<2x4xbf16>
      %c0_11 = arith.constant 0 : index
      %c0_12 = arith.constant 0 : index
      %15 = vector.load %arg3[%c0_11, %c0_12] : memref<4x128xbf16, #tpu.memory_space<vmem>>, vector<4x128xbf16>
      %cst_13 = arith.constant dense<0.000000e+00> : vector<2x128xf32>
      %16 = tpu.matmul %14, %15, %cst_13 {dimension_numbers = #tpu.dot_dimension_numbers<[1], [0], [0], [1], [0, 0, 1, 1], [], []>} : vector<2x4xbf16>, vector<4x128xbf16>, vector<2x128xf32> -> vector<2x128xf32>
      %c0_14 = arith.constant 0 : index
      %c0_15 = arith.constant 0 : index
      %17 = vector.load %arg4[%c0_14, %c0_15] : memref<1x128xf32, #tpu.memory_space<vmem>>, vector<1x128xf32>
      %18 = vector.broadcast %17 : vector<1x128xf32> to vector<2x128xf32>
      %19 = arith.addf %16, %18 : vector<2x128xf32>
      %cst_16 = arith.constant 0.000000e+00 : f32
      %20 = vector.broadcast %cst_16 : f32 to vector<2x128xf32>
      %21 = arith.maximumf %19, %20 : vector<2x128xf32>
      %22 = arith.truncf %21 : vector<2x128xf32> to vector<2x128xbf16>
      %c0_17 = arith.constant 0 : index
      %c0_18 = arith.constant 0 : index
      %23 = vector.load %arg5[%c0_17, %c0_18] : memref<128x128xbf16, #tpu.memory_space<vmem>>, vector<128x128xbf16>
      %cst_19 = arith.constant dense<0.000000e+00> : vector<2x128xf32>
      %24 = tpu.matmul %22, %23, %cst_19 {dimension_numbers = #tpu.dot_dimension_numbers<[1], [0], [0], [1], [0, 0, 1, 1], [], []>} : vector<2x128xbf16>, vector<128x128xbf16>, vector<2x128xf32> -> vector<2x128xf32>
      %c0_20 = arith.constant 0 : index
      %c0_21 = arith.constant 0 : index
      %25 = vector.load %arg6[%c0_20, %c0_21] : memref<1x128xf32, #tpu.memory_space<vmem>>, vector<1x128xf32>
      %26 = vector.broadcast %25 : vector<1x128xf32> to vector<2x128xf32>
      %27 = arith.addf %24, %26 : vector<2x128xf32>
      %c0_22 = arith.constant 0 : index
      %c0_23 = arith.constant 0 : index
      %28 = vector.load %arg7[%c0_22, %c0_23] : memref<2x128xf32, #tpu.memory_space<vmem>>, vector<2x128xf32>
      tpu.vector_store %arg7[%c0_22, %c0_23], %27 {strides = array<i32>} : memref<2x128xf32, #tpu.memory_space<vmem>>, vector<2x128xf32>,
    } else {
    }
    return
  }
  func.func @transform_0(%arg0: i32, %arg1: i32) -> (i32, i32, i32) {
    %c0_i32 = arith.constant 0 : i32
    %c0_i32_0 = arith.constant 0 : i32
    return %arg0, %c0_i32, %arg1 : i32, i32, i32
  }
  func.func @transform_1(%arg0: i32, %arg1: i32) -> (i32, i32) {
    %c0_i32 = arith.constant 0 : i32
    %c0_i32_0 = arith.constant 0 : i32
    %c0_i32_1 = arith.constant 0 : i32
    return %c0_i32, %c0_i32_0 : i32, i32
  }
  func.func @transform_2(%arg0: i32, %arg1: i32) -> (i32, i32) {
    %c0_i32 = arith.constant 0 : i32
    %c0_i32_0 = arith.constant 0 : i32
    %c0_i32_1 = arith.constant 0 : i32
    return %c0_i32, %c0_i32_0 : i32, i32
  }
  func.func @transform_3(%arg0: i32, %arg1: i32) -> (i32, i32) {
    %c0_i32 = arith.constant 0 : i32
    %c0_i32_0 = arith.constant 0 : i32
    %c0_i32_1 = arith.constant 0 : i32
    return %c0_i32, %c0_i32_0 : i32, i32
  }
  func.func @transform_4(%arg0: i32, %arg1: i32) -> (i32, i32) {
    %c0_i32 = arith.constant 0 : i32
    %c0_i32_0 = arith.constant 0 : i32
    %c0_i32_1 = arith.constant 0 : i32
    return %c0_i32, %c0_i32_0 : i32, i32
  }
  func.func @transform_5(%arg0: i32, %arg1: i32) -> (i32, i32) {
    %c0_i32 = arith.constant 0 : i32
    %c0_i32_0 = arith.constant 0 : i32
    return %arg0, %c0_i32 : i32, i32
  }
}

</mosaic_0001>

<llo_original>
// kernel: tpu_custom_call.1
$region0: #{tpu_custom_call.1}
  #allocation0 [shape = 'u32[]', space=smem, size = 0x4, offset = 0x4, fixed_abs, tag = 'smem constant byte address 0x4 - core index']
  #allocation1 [shape = 'u32[144,128]{1,0:T(1,128)}', space=vmem, size = 0x12000, scoped, tag = 'internal scratch']
  #allocation2 [shape = 'f32[2,4]{1,0:T(2,128)}', space=vmem, size = 0x400, scoped, tag = 'scratch operand']
  %s0 = inlined_call_operand.hbm [shape: f32[2,4,256], index: 0, kind: input, shape index: {}]
  %s1 = inlined_call_operand.hbm [shape: bf16[4,128], index: 1, kind: input, shape index: {}]
  %s2 = inlined_call_operand.vmem [shape: f32[1,128], index: 2, kind: input, shape index: {}]
  %s3 = inlined_call_operand.hbm [shape: bf16[128,128], index: 3, kind: input, shape index: {}]
  %s4 = inlined_call_operand.vmem [shape: f32[1,128], index: 4, kind: input, shape index: {}]
  %s5 = inlined_call_operand.hbm [shape: f32[2,128], index: 5, kind: output, shape index: {}]
  %s6 = sld [smem:[#allocation0]]
  $region73: #{tpu_custom_call.1} parent=0
    _
  %s8 = ssub.s32 1, %s6
  %s9 = scalar_select 0, %s8, %s6
  $region1: #{tpu_custom_call.1} parent=0
    #allocation3 [shape = 'u8[8192]{0}', space=vmem, size = 0x2000, scoped, tag = 'input window, operand 0']
    #allocation4 [shape = 's32[2]{0}', space=sflag, size = 0x8, scoped, tag = 'scoped memory for tpu_custom_call.1']
    #allocation5 [shape = 's32[2]{0}', space=sflag, size = 0x8, scoped, tag = 'scoped memory for tpu_custom_call.1']
    #allocation6 [shape = 'u8[1024]{0}', space=vmem, size = 0x400, scoped, tag = 'input window, operand 1, single buffered']
    #allocation7 [shape = 's32[1]{0}', space=sflag, size = 0x4, scoped, tag = 'scoped memory for tpu_custom_call.1']
    #allocation8 [shape = 'u8[32768]{0}', space=vmem, size = 0x8000, scoped, tag = 'input window, operand 3, single buffered']
    #allocation9 [shape = 'u8[1024]{0}', space=vmem, size = 0x400, scoped, tag = 'output window, operand 0, single buffered']
    %10 = vsyncpa [#allocation4], 0
    %s11 = scalar_lea.sflag [#allocation4], 1
    %12 = vsyncpa %s11, 0
    %13 = vsyncpa [#allocation7], 0
    %14 = vsyncpa [#allocation5], 0
    loop: start=0, step=1, limit=4
    $region2: #{tpu_custom_call.1} parent=1 // loop_pre_header
      _
    $region3: #{tpu_custom_call.1} parent=1 // loop_header
      %s16 = sphi 0, %s20
      %p17 = scmp.ge.s32.totalorder %s16, 4
      %s23 = sphi 0, %s35
      %s24 = sphi 0, %s31
      %s25 = sphi 0, %s23
      %s26 = sphi 0, %s24
      %s27 = sphi 0, %s25
      %s28 = sphi 0, %s26
      %s40 = sphi 0, %s42
      %s43 = sphi 0, %s40
      %s44 = sphi 0, %s43
      %s60 = sphi 0, %s44
      %s64 = sphi 0, %s64
      %s66 = sphi 0, %s64
      %s67 = sphi 0, %s66
      %s81 = sphi 0, %s67
      %s85 = sphi 0, %s85
      %s87 = sphi 0, %s85
      %s88 = sphi 0, %s87
      %s102 = sphi 0, %s88
      %s106 = sphi 0, %s106
      %s108 = sphi 0, %s106
      %s109 = sphi 0, %s108
      %s123 = sphi 0, %s109
      %s127 = sphi 0, %s127
      %s129 = sphi 0, %s127
      %s130 = sphi 0, %s129
      %s144 = sphi 0, %s130
      %s150 = sphi 0, %s152
      %s153 = sphi 0, %s150
      %s154 = sphi 0, %s153
      %s170 = sphi 0, %s154
    $region4: #{tpu_custom_call.1} parent=1 // loop_header_branch
      %19 = sbr.rel (%p17) target = $region8
    $region5: #{tpu_custom_call.1} parent=1 // loop_body
      %s21 = ssub.s32 %s16, 1
      %s22 = ssub.s32 %s16, 2
      %s29 = sadd.s32 1, %s24
      %p30 = scmp.ge.s32.totalorder %s29, 2
      %s31 = scalar_select %p30, 0, %s29
      %s32 = sadd.s32 1, %s23
      %s33 = scalar_select %p30, %s32, %s23
      %p34 = scmp.ge.s32.totalorder %s33, 1
      %s35 = scalar_select %p34, 0, %s33
      %s36 = ssub.s32 %s23, %s35
      %s37 = ssub.s32 %s24, %s31
      %s38 = sor.u32 %s36, %s37
      %p39 = scmp.eq.s32.totalorder %s38, 0
      %s41 = sadd.s32 %s40, 1
      %s42 = scalar_select %p39, %s40, %s41
      %p45 = pneg %p39
      %p46 = scmp.eq.s32.totalorder %s16, 1
      %p47 = por %p45, %p46
      %p48 = scmp.ne.s32.totalorder %s40, %s43
      %p49 = scmp.eq.s32.totalorder %s16, 0
      %p50 = por %p48, %p49
      %p51 = scmp.ne.s32.totalorder %s40, %s43
      %p52 = scmp.eq.s32.totalorder %s21, 1
      %p53 = por %p51, %p52
      %p54 = scmp.ne.s32.totalorder %s43, %s44
      %p55 = scmp.eq.s32.totalorder %s21, 0
      %p56 = por %p54, %p55
      %p57 = scmp.ne.s32.totalorder %s43, %s44
      %p58 = scmp.eq.s32.totalorder %s22, 1
      %p59 = por %p57, %p58
      %p61 = scmp.ne.s32.totalorder %s44, %s60
      %p62 = scmp.eq.s32.totalorder %s22, 0
      %p63 = por %p61, %p62
      %s65 = sadd.s32 %s64, 1
      %p68 = scmp.eq.s32.totalorder %s16, 1
      %p69 = scmp.ne.s32.totalorder %s64, %s66
      %p70 = scmp.eq.s32.totalorder %s16, 0
      %p71 = por %p69, %p70
      %p72 = scmp.ne.s32.totalorder %s64, %s66
      %p73 = scmp.eq.s32.totalorder %s21, 1
      %p74 = por %p72, %p73
      %p75 = scmp.ne.s32.totalorder %s66, %s67
      %p76 = scmp.eq.s32.totalorder %s21, 0
      %p77 = por %p75, %p76
      %p78 = scmp.ne.s32.totalorder %s66, %s67
      %p79 = scmp.eq.s32.totalorder %s22, 1
      %p80 = por %p78, %p79
      %p82 = scmp.ne.s32.totalorder %s67, %s81
      %p83 = scmp.eq.s32.totalorder %s22, 0
      %p84 = por %p82, %p83
      %s86 = sadd.s32 %s85, 1
      %p89 = scmp.eq.s32.totalorder %s16, 1
      %p90 = scmp.ne.s32.totalorder %s85, %s87
      %p91 = scmp.eq.s32.totalorder %s16, 0
      %p92 = por %p90, %p91
      %p93 = scmp.ne.s32.totalorder %s85, %s87
      %p94 = scmp.eq.s32.totalorder %s21, 1
      %p95 = por %p93, %p94
      %p96 = scmp.ne.s32.totalorder %s87, %s88
      %p97 = scmp.eq.s32.totalorder %s21, 0
      %p98 = por %p96, %p97
      %p99 = scmp.ne.s32.totalorder %s87, %s88
      %p100 = scmp.eq.s32.totalorder %s22, 1
      %p101 = por %p99, %p100
      %p103 = scmp.ne.s32.totalorder %s88, %s102
      %p104 = scmp.eq.s32.totalorder %s22, 0
      %p105 = por %p103, %p104
      %s107 = sadd.s32 %s106, 1
      %p110 = scmp.eq.s32.totalorder %s16, 1
      %p111 = scmp.ne.s32.totalorder %s106, %s108
      %p112 = scmp.eq.s32.totalorder %s16, 0
      %p113 = por %p111, %p112
      %p114 = scmp.ne.s32.totalorder %s106, %s108
      %p115 = scmp.eq.s32.totalorder %s21, 1
      %p116 = por %p114, %p115
      %p117 = scmp.ne.s32.totalorder %s108, %s109
      %p118 = scmp.eq.s32.totalorder %s21, 0
      %p119 = por %p117, %p118
      %p120 = scmp.ne.s32.totalorder %s108, %s109
      %p121 = scmp.eq.s32.totalorder %s22, 1
      %p122 = por %p120, %p121
      %p124 = scmp.ne.s32.totalorder %s109, %s123
      %p125 = scmp.eq.s32.totalorder %s22, 0
      %p126 = por %p124, %p125
      %s128 = sadd.s32 %s127, 1
      %p131 = scmp.eq.s32.totalorder %s16, 1
      %p132 = scmp.ne.s32.totalorder %s127, %s129
      %p133 = scmp.eq.s32.totalorder %s16, 0
      %p134 = por %p132, %p133
      %p135 = scmp.ne.s32.totalorder %s127, %s129
      %p136 = scmp.eq.s32.totalorder %s21, 1
      %p137 = por %p135, %p136
      %p138 = scmp.ne.s32.totalorder %s129, %s130
      %p139 = scmp.eq.s32.totalorder %s21, 0
      %p140 = por %p138, %p139
      %p141 = scmp.ne.s32.totalorder %s129, %s130
      %p142 = scmp.eq.s32.totalorder %s22, 1
      %p143 = por %p141, %p142
      %p145 = scmp.ne.s32.totalorder %s130, %s144
      %p146 = scmp.eq.s32.totalorder %s22, 0
      %p147 = por %p145, %p146
      %s148 = ssub.s32 %s23, %s35
      %p149 = scmp.eq.s32.totalorder %s148, 0
      %s151 = sadd.s32 %s150, 1
      %s152 = scalar_select %p149, %s150, %s151
      %p155 = pneg %p149
      %p156 = scmp.eq.s32.totalorder %s16, 1
      %p157 = por %p155, %p156
      %p158 = scmp.ne.s32.totalorder %s150, %s153
      %p159 = scmp.eq.s32.totalorder %s16, 0
      %p160 = por %p158, %p159
      %p161 = scmp.ne.s32.totalorder %s150, %s153
      %p162 = scmp.eq.s32.totalorder %s21, 1
      %p163 = por %p161, %p162
      %p164 = scmp.ne.s32.totalorder %s153, %s154
      %p165 = scmp.eq.s32.totalorder %s21, 0
      %p166 = por %p164, %p165
      %p167 = scmp.ne.s32.totalorder %s153, %s154
      %p168 = scmp.eq.s32.totalorder %s22, 1
      %p169 = por %p167, %p168
      %p171 = scmp.ne.s32.totalorder %s154, %s170
      %p172 = scmp.eq.s32.totalorder %s22, 0
      %p173 = por %p171, %p172
      %p174 = scmp.le.s32.totalorder 1, %s16
      %p175 = scmp.lt.s32.totalorder %s16, 3
      %p176 = pnand %p174, %p175
      %p177 = pneg %p176
      // Predicated region
      $region9: #{tpu_custom_call.1} parent=5 // pred_check
        _
      $region10: #{tpu_custom_call.1} parent=5 // pred_check_branch
        %179 = sbr.rel (%p176) target = $region12
      $region11: #{tpu_custom_call.1} parent=5 // pred_region
        %s180 = ssub.s32 %s16, 1
        // Predicated region
        $region13: #{tpu_custom_call.1} parent=11 // pred_check
          %p181 = pneg %p77
        $region14: #{tpu_custom_call.1} parent=11 // pred_check_branch
          %183 = sbr.rel (%p181) target = $region16
        $region15: #{tpu_custom_call.1} parent=11 // pred_region
          %s185 = ssub.s32 32, 32
          %186 = vsyncadd [#allocation7], %s185
          %s188 = sshll.u32 [#allocation6], 4
          %s189 = int_to_ptr.vmem [resolvable:$true] %s188
          %191 = dma.hbm_to_vmem [thread:$0]  %s1, 32, %s189, [#allocation7]
        $region16: #{tpu_custom_call.1} parent=11 // pred_fallthru
          _
        // Predicated region
        $region17: #{tpu_custom_call.1} parent=11 // pred_check
          %p192 = pneg %p98
        $region18: #{tpu_custom_call.1} parent=11 // pred_check_branch
          %194 = sbr.rel (%p192) target = $region20
        $region19: #{tpu_custom_call.1} parent=11 // pred_region
          _
        $region20: #{tpu_custom_call.1} parent=11 // pred_fallthru
          _
        // Predicated region
        $region21: #{tpu_custom_call.1} parent=11 // pred_check
          %p195 = pneg %p119
        $region22: #{tpu_custom_call.1} parent=11 // pred_check_branch
          %197 = sbr.rel (%p195) target = $region24
        $region23: #{tpu_custom_call.1} parent=11 // pred_region
          %s199 = ssub.s32 1024, 1024
          %200 = vsyncadd [#allocation7], %s199
          %s201 = sshll.u32 [#allocation8], 4
          %s202 = int_to_ptr.vmem [resolvable:$true] %s201
          %207 = dma.hbm_to_vmem [thread:$0]  %s3, 1024, %s202, [#allocation7], 64, 64, 4
        $region24: #{tpu_custom_call.1} parent=11 // pred_fallthru
          _
        // Predicated region
        $region25: #{tpu_custom_call.1} parent=11 // pred_check
          %p208 = pneg %p140
        $region26: #{tpu_custom_call.1} parent=11 // pred_check_branch
          %210 = sbr.rel (%p208) target = $region28
        $region27: #{tpu_custom_call.1} parent=11 // pred_region
          _
        $region28: #{tpu_custom_call.1} parent=11 // pred_fallthru
          _
      $region12: #{tpu_custom_call.1} parent=5 // pred_fallthru
        _
      %p211 = scmp.lt.s32.totalorder %s16, 2
      // Predicated region
      $region29: #{tpu_custom_call.1} parent=5 // pred_check
        %p212 = pneg %p211
      $region30: #{tpu_custom_call.1} parent=5 // pred_check_branch
        %214 = sbr.rel (%p212) target = $region32
      $region31: #{tpu_custom_call.1} parent=5 // pred_region
        // Predicated region
        $region33: #{tpu_custom_call.1} parent=31 // pred_check
          %p215 = pneg %p50
        $region34: #{tpu_custom_call.1} parent=31 // pred_check_branch
          %217 = sbr.rel (%p215) target = $region36
        $region35: #{tpu_custom_call.1} parent=31 // pred_region
          %s218 = sand.u32 %s40, 1
          %s219 = scalar_lea.sflag [#allocation4], %s218
          %s220 = sand.u32 %s40, 1
          %s221 = smul.addr %s220, 8
          %s222 = scalar_lea.vmem [#allocation3], %s221
          %s223 = smul.u32 2, %s23
          %s225 = ssub.s32 128, 128
          %226 = vsyncadd %s219, %s225
          %s227 = smul.addr %s223, 2
          %s228 = sadd.s32 %s24, %s227
          %s229 = smul.addr %s228, 64
          %s230 = scalar_lea.hbm %s0, %s229
          %s231 = sshll.u32 %s222, 4
          %s232 = int_to_ptr.vmem [resolvable:$true] %s231
          %237 = dma.hbm_to_vmem [thread:$0]  %s230, 128, %s232, %s219, 128, 64, 4
        $region36: #{tpu_custom_call.1} parent=31 // pred_fallthru
          _
      $region32: #{tpu_custom_call.1} parent=5 // pred_fallthru
        _
      %p238 = scmp.le.s32.totalorder 1, %s16
      %p239 = scmp.lt.s32.totalorder %s16, 3
      %p240 = pnand %p238, %p239
      %p241 = pneg %p240
      // Predicated region
      $region37: #{tpu_custom_call.1} parent=5 // pred_check
        _
      $region38: #{tpu_custom_call.1} parent=5 // pred_check_branch
        %243 = sbr.rel (%p240) target = $region40
      $region39: #{tpu_custom_call.1} parent=5 // pred_region
        %s244 = ssub.s32 %s16, 1
        %s245 = sand.u32 %s43, 1
        %s246 = scalar_lea.sflag [#allocation4], %s245
        %s247 = sand.u32 %s43, 1
        %s248 = smul.addr %s247, 8
        %s249 = scalar_lea.vmem [#allocation3], %s248
        // Predicated region
        $region41: #{tpu_custom_call.1} parent=39 // pred_check
          %p250 = pneg %p56
        $region42: #{tpu_custom_call.1} parent=39 // pred_check_branch
          %252 = sbr.rel (%p250) target = $region44
        $region43: #{tpu_custom_call.1} parent=39 // pred_region
          %253 = dma.done %s246, 128
        $region44: #{tpu_custom_call.1} parent=39 // pred_fallthru
          _
        // Predicated region
        $region45: #{tpu_custom_call.1} parent=39 // pred_check
          %p254 = pneg %p77
        $region46: #{tpu_custom_call.1} parent=39 // pred_check_branch
          %256 = sbr.rel (%p254) target = $region48
        $region47: #{tpu_custom_call.1} parent=39 // pred_region
          %257 = dma.done [#allocation7], 32
        $region48: #{tpu_custom_call.1} parent=39 // pred_fallthru
          _
        // Predicated region
        $region49: #{tpu_custom_call.1} parent=39 // pred_check
          %p258 = pneg %p119
        $region50: #{tpu_custom_call.1} parent=39 // pred_check_branch
          %260 = sbr.rel (%p258) target = $region52
        $region51: #{tpu_custom_call.1} parent=39 // pred_region
          %261 = dma.done [#allocation7], 1024
        $region52: #{tpu_custom_call.1} parent=39 // pred_fallthru
          _
        %s262 = sand.u32 %s43, 1
        %s263 = scalar_lea.sflag [#allocation4], %s262
        %s264 = sand.u32 %s43, 1
        %s265 = smul.addr %s264, 8
        %s266 = scalar_lea.vmem [#allocation3], %s265
        %p267 = pneg %p56
        %p268 = pneg %p53
        %p269 = pneg %p77
        %p270 = pneg %p74
        %p271 = pneg %p98
        %p272 = pneg %p95
        %p273 = pneg %p119
        %p274 = pneg %p116
        %p275 = pneg %p140
        %p276 = pneg %p137
        %p277 = pneg %p166
        %p278 = pneg %p163
        %s279 = smul.u32 2, %s25
        %p281 = scmp.eq.s32.totalorder %s26, 0
        // Predicated region
        $region53: #{tpu_custom_call.1} parent=39 // pred_check
          %p282 = pneg %p281
        $region54: #{tpu_custom_call.1} parent=39 // pred_check_branch
          %284 = sbr.rel (%p282) target = $region56
        $region55: #{tpu_custom_call.1} parent=39 // pred_region
          %vm285 = vcmask 25600
          %286 = vst.msk [vmem:[#allocation2] sm:$0x3] %vm285, 0.0
        $region56: #{tpu_custom_call.1} parent=39 // pred_fallthru
          _
        %v287 = vld [vmem:[#allocation2] sm:$0x3]
        %v288 = vld [vmem:[%s249] sm:$0xf]
        %v289 = vld [vmem:[%s249 + $0x4] sm:$0xf]
        %vm290 = vcmask 1043456
        %v291 = vsel %vm290, %v288, 0.0
        %292 = vadd.xlane.f32.xlu0 %v291
        %v293 = vpop.xlane.xlu0 %292
        %v294 = vsel %vm290, %v289, 0.0
        %295 = vadd.xlane.f32.xlu0 %v294
        %v296 = vpop.xlane.xlu0 %295
        %v299 = vlaneseq
        %v300 = vand.u32 %v299, 127
        %v301 = vlaneseq
        %v302 = vshrl.u32 %v301, 7
        %v303 = vsub.s32 %v300, %v302
        %v304 = vrot.slane %v293, %v303
        %v305 = vlaneseq
        %v306 = vshrl.u32 %v305, 7
        %v307 = vsub.s32 %v300, %v306
        %v308 = vrot.slane %v296, %v307
        %vm309 = vcmask 1041409
        %v310 = vsel %vm309, %v308, %v304
        %v312 = vadd.f32 %v287, %v310
        %vm313 = vcmask 25600
        %314 = vst.msk [vmem:[#allocation2] sm:$0x3] %vm313, %v312
        %p315 = scmp.eq.s32.totalorder %s26, 1
        // Predicated region
        $region57: #{tpu_custom_call.1} parent=39 // pred_check
          %p316 = pneg %p315
        $region58: #{tpu_custom_call.1} parent=39 // pred_check_branch
          %318 = sbr.rel (%p316) target = $region60
        $region59: #{tpu_custom_call.1} parent=39 // pred_region
          %v319 = vld [vmem:[#allocation2] sm:$0x3]
          %v320 = vmul.f32 %v319, 0.00390625
          %v321 = vpack.c.bf16 %v320, %v320
          %v322 = vld [vmem:[#allocation6] sm:$0x3]
          %v323 = vld [vmem:[%s2] sm:$0x1]
          %v325 = vlaneseq
          %v326 = vshrl.u32 %v325, 7
          %v327 = vsub.s32 0, %v326
          %v328 = vrot.slane %v323, %v327
          %vm330 = vcmask 31744
          %v332 = vsel %vm330, %v321, 0
          %vm334 = vcmask 1041408
          %v336 = vsel %vm334, %v322, 0
          %338 = vmatprep.subr.bf16.mxu0 0
          %339 = vmatpush1.bf16.msra.mxu0 0
          %340 = vmatprep.subr.bf16.mxu0 0
          %341 = vmatpush1.bf16.msra.mxu0 0
          %342 = vmatprep.subr.bf16.mxu0 0
          %343 = vmatpush1.bf16.msra.mxu0 0
          %344 = vmatprep.subr.bf16.mxu0 0
          %345 = vmatpush1.bf16.msra.mxu0 0
          %346 = vmatprep.subr.bf16.mxu0 0
          %347 = vmatpush1.bf16.msra.mxu0 0
          %348 = vmatprep.subr.bf16.mxu0 0
          %349 = vmatpush1.bf16.msra.mxu0 0
          %350 = vmatprep.subr.bf16.mxu0 0
          %351 = vmatpush1.bf16.msra.mxu0 0
          %352 = vmatprep.subr.bf16.mxu0 0
          %353 = vmatpush1.bf16.msra.mxu0 %v336
          %354 = vmatprep.subr.bf16.mxu0 0
          %355 = vmatpush2.bf16.msra.mxu0 0
          %356 = vmatprep.subr.bf16.mxu0 0
          %357 = vmatpush2.bf16.msra.mxu0 0
          %358 = vmatprep.subr.bf16.mxu0 0
          %359 = vmatpush2.bf16.msra.mxu0 0
          %360 = vmatprep.subr.bf16.mxu0 0
          %361 = vmatpush2.bf16.msra.mxu0 0
          %362 = vmatprep.subr.bf16.mxu0 0
          %363 = vmatpush2.bf16.msra.mxu0 0
          %364 = vmatprep.subr.bf16.mxu0 0
          %365 = vmatpush2.bf16.msra.mxu0 0
          %366 = vmatprep.subr.bf16.mxu0 0
          %367 = vmatpush2.bf16.msra.mxu0 0
          %368 = vmatprep.subr.bf16.mxu0 0
          %369 = vmatpush2.bf16.msra.mxu0 0
          %370 = vmatprep.mubr.bf16.mxu0 0
          %371 = vmatmul.mubr.bf16.gmra.mxu0 %v332
          %v372 = vpop.f32.mrf.mxu0
          %v373 = vadd.f32 %v328, %v372
          %v374 = vpop.f32.mrf.mxu0
          %v375 = vpop.f32.mrf.mxu0
          %v376 = vpop.f32.mrf.mxu0
          %377 = vdwg.mxu0
          %v378 = vmax.f32 %v373, 0.0
          %v379 = vpack.c.bf16 %v378, %v378
          %v380 = vld [vmem:[#allocation8] sm:$0xf]
          %v381 = vld [vmem:[#allocation8 + $0x4] sm:$0xf]
          %v382 = vld [vmem:[#allocation8 + $0x8] sm:$0xf]
          %v383 = vld [vmem:[#allocation8 + $0xc] sm:$0xf]
          %v384 = vld [vmem:[#allocation8 + $0x10] sm:$0xf]
          %v385 = vld [vmem:[#allocation8 + $0x14] sm:$0xf]
          %v386 = vld [vmem:[#allocation8 + $0x18] sm:$0xf]
          %v387 = vld [vmem:[#allocation8 + $0x1c] sm:$0xf]
          %v388 = vld [vmem:[#allocation8 + $0x20] sm:$0xf]
          %v389 = vld [vmem:[#allocation8 + $0x24] sm:$0xf]
          %v390 = vld [vmem:[#allocation8 + $0x28] sm:$0xf]
          %v391 = vld [vmem:[#allocation8 + $0x2c] sm:$0xf]
          %v392 = vld [vmem:[#allocation8 + $0x30] sm:$0xf]
          %v393 = vld [vmem:[#allocation8 + $0x34] sm:$0xf]
          %v394 = vld [vmem:[#allocation8 + $0x38] sm:$0xf]
          %v395 = vld [vmem:[#allocation8 + $0x3c] sm:$0xf]
          %v396 = vld [vmem:[%s4] sm:$0x1]
          %v398 = vlaneseq
          %v399 = vshrl.u32 %v398, 7
          %v400 = vsub.s32 0, %v399
          %v401 = vrot.slane %v396, %v400
          %v419 = vunpack.c.l.b16 %v380
          %v420 = vunpack.c.l.b16 %v381
          %v421 = vunpack.c.l.b16 %v382
          %v422 = vunpack.c.l.b16 %v383
          %v423 = vunpack.c.l.b16 %v384
          %v424 = vunpack.c.l.b16 %v385
          %v425 = vunpack.c.l.b16 %v386
          %v426 = vunpack.c.l.b16 %v387
          %v427 = vunpack.c.l.b16 %v388
          %v428 = vunpack.c.l.b16 %v389
          %v429 = vunpack.c.l.b16 %v390
          %v430 = vunpack.c.l.b16 %v391
          %v431 = vunpack.c.l.b16 %v392
          %v432 = vunpack.c.l.b16 %v393
          %v433 = vunpack.c.l.b16 %v394
          %v434 = vunpack.c.l.b16 %v395
          %v435 = vpack.c.b16 %v420, %v419
          %v436 = vpack.c.b16 %v422, %v421
          %v437 = vpack.c.b16 %v424, %v423
          %v438 = vpack.c.b16 %v426, %v425
          %v439 = vpack.c.b16 %v428, %v427
          %v440 = vpack.c.b16 %v430, %v429
          %v441 = vpack.c.b16 %v432, %v431
          %v442 = vpack.c.b16 %v434, %v433
          %451 = vmatprep.subr.bf16.mxu0 0
          %452 = vmatpush1.bf16.msra.mxu0 %v442
          %453 = vmatprep.subr.bf16.mxu0 0
          %454 = vmatpush1.bf16.msra.mxu0 %v441
          %455 = vmatprep.subr.bf16.mxu0 0
          %456 = vmatpush1.bf16.msra.mxu0 %v440
          %457 = vmatprep.subr.bf16.mxu0 0
          %458 = vmatpush1.bf16.msra.mxu0 %v439
          %459 = vmatprep.subr.bf16.mxu0 0
          %460 = vmatpush1.bf16.msra.mxu0 %v438
          %461 = vmatprep.subr.bf16.mxu0 0
          %462 = vmatpush1.bf16.msra.mxu0 %v437
          %463 = vmatprep.subr.bf16.mxu0 0
          %464 = vmatpush1.bf16.msra.mxu0 %v436
          %465 = vmatprep.subr.bf16.mxu0 0
          %466 = vmatpush1.bf16.msra.mxu0 %v435
          %467 = vmatprep.subr.bf16.mxu0 0
          %468 = vmatpush2.bf16.msra.mxu0 0
          %469 = vmatprep.subr.bf16.mxu0 0
          %470 = vmatpush2.bf16.msra.mxu0 0
          %471 = vmatprep.subr.bf16.mxu0 0
          %472 = vmatpush2.bf16.msra.mxu0 0
          %473 = vmatprep.subr.bf16.mxu0 0
          %474 = vmatpush2.bf16.msra.mxu0 0
          %475 = vmatprep.subr.bf16.mxu0 0
          %476 = vmatpush2.bf16.msra.mxu0 0
          %477 = vmatprep.subr.bf16.mxu0 0
          %478 = vmatpush2.bf16.msra.mxu0 0
          %479 = vmatprep.subr.bf16.mxu0 0
          %480 = vmatpush2.bf16.msra.mxu0 0
          %481 = vmatprep.subr.bf16.mxu0 0
          %482 = vmatpush2.bf16.msra.mxu0 0
          %483 = vmatprep.mubr.bf16.mxu0 0
          %484 = vmatmul.mubr.bf16.gmra.mxu0 %v379
          %v485 = vpop.f32.mrf.mxu0
          %v486 = vadd.f32 %v401, %v485
          %v487 = vpop.f32.mrf.mxu0
          %v488 = vpop.f32.mrf.mxu0
          %v489 = vpop.f32.mrf.mxu0
          %490 = vdwg.mxu0
          %491 = vst [vmem:[#allocation9] sm:$0x3] %v486
        $region60: #{tpu_custom_call.1} parent=39 // pred_fallthru
          _
        // Predicated region
        $region61: #{tpu_custom_call.1} parent=39 // pred_check
          %p492 = pneg %p163
        $region62: #{tpu_custom_call.1} parent=39 // pred_check_branch
          %494 = sbr.rel (%p492) target = $region64
        $region63: #{tpu_custom_call.1} parent=39 // pred_region
          %s496 = ssub.s32 32, 32
          %497 = vsyncadd [#allocation5], %s496
          %s498 = smul.addr %s25, 32
          %s499 = scalar_lea.hbm %s5, %s498
          %s501 = sshll.u32 [#allocation9], 4
          %s502 = int_to_ptr.vmem [resolvable:$true] %s501
          %504 = dma.vmem_to_hbm [thread:$0]  %s502, 32, %s499, [#allocation5]
        $region64: #{tpu_custom_call.1} parent=39 // pred_fallthru
          _
        // Predicated region
        $region65: #{tpu_custom_call.1} parent=39 // pred_check
          %p505 = pneg %p163
        $region66: #{tpu_custom_call.1} parent=39 // pred_check_branch
          %507 = sbr.rel (%p505) target = $region68
        $region67: #{tpu_custom_call.1} parent=39 // pred_region
          %508 = dma.done [#allocation5], 32
        $region68: #{tpu_custom_call.1} parent=39 // pred_fallthru
          _
      $region40: #{tpu_custom_call.1} parent=5 // pred_fallthru
        _
      %p509 = scmp.le.s32.totalorder 2, %s16
      // Predicated region
      $region69: #{tpu_custom_call.1} parent=5 // pred_check
        %p510 = pneg %p509
      $region70: #{tpu_custom_call.1} parent=5 // pred_check_branch
        %512 = sbr.rel (%p510) target = $region72
      $region71: #{tpu_custom_call.1} parent=5 // pred_region
        %s513 = ssub.s32 %s16, 2
      $region72: #{tpu_custom_call.1} parent=5 // pred_fallthru
        _
    $region6: #{tpu_custom_call.1} parent=1 // loop_footer
      %s20 = sadd.s32 1, %s16
    $region7: #{tpu_custom_call.1} parent=1 // loop_footer_branch
      %15 = sbr.rel target = $region3
    $region8: #{tpu_custom_call.1} parent=1 // loop_exit
      _
    %514 = vsyncpa [#allocation4], 1
    %s515 = scalar_lea.sflag [#allocation4], 1
    %516 = vsyncpa %s515, 1
    %517 = vsyncpa [#allocation7], 1
    %518 = vsyncpa [#allocation5], 1
    %s519 = scalar_lea.sflag [#allocation5], 1
    %520 = vsyncpa %s519, 1

</llo_original>
